<compile_context>
chip_gen: v7x
topology: tpu7x:2x2x1
jax: 0.10.0
libtpu: 0.0.40
codegen_flags: <defaults>
</compile_context>

<pallas_src>
import functools

import jax
import jax.numpy as jnp
from jax import lax
from jax.experimental import pallas as pl
from jax.experimental.pallas import tpu as pltpu


def _round_up(n: int, m: int) -> int:
    return ((n + m - 1) // m) * m


def _topk_router_kernel(x_ref, wt_ref, fw_ref, idx_ref, *, k: int, num_experts: int):
    # In-kernel downcast (VPU) to the MXU-native weight dtype; x streams from
    # HBM at its native dtype so there is no separate XLA cast pass over x.
    x = x_ref[...].astype(wt_ref.dtype)                            # (TB, F)
    wt = wt_ref[...]                                               # (F, E_pad) resident
    logits = jnp.dot(x, wt, preferred_element_type=jnp.float32)    # (TB, E_pad) f32

    tb, e_pad = logits.shape
    idx_pad = idx_ref.shape[-1]
    col = lax.broadcasted_iota(jnp.int32, (tb, e_pad), 1)
    lane = lax.broadcasted_iota(jnp.int32, (tb, idx_pad), 1)
    neg_inf = jnp.float32(-jnp.inf)

    # Padded expert columns (zero weight columns) must never win the top-k.
    if num_experts < e_pad:
        work = jnp.where(col < num_experts, logits, neg_inf)
    else:
        work = logits

    # Fused top-k + softmax + scatter: one (TB, E_pad) accumulator, one pass.
    full = jnp.zeros((tb, e_pad), jnp.float32)
    denom = jnp.zeros((tb, 1), jnp.float32)
    idx_full = jnp.zeros((tb, idx_pad), jnp.int32)   # lane-dense index tile
    m0 = None
    for step in range(k):
        m = jnp.max(work, axis=-1, keepdims=True)                  # (TB, 1)
        if step == 0:
            m0 = m                       # global max -> numerically stable softmax
        is_max = work == m
        # first occurrence among ties, matching torch.topk
        idx = jnp.min(jnp.where(is_max, col, e_pad), axis=-1, keepdims=True)
        onehot = col == idx
        e = jnp.exp(m - m0)                                        # (TB, 1), EUP
        full = full + jnp.where(onehot, e, 0.0)                    # fused scatter
        denom = denom + e
        idx_full = jnp.where(lane == step, idx, idx_full)          # lane-dense write
        work = jnp.where(onehot, neg_inf, work)

    inv = 1.0 / denom          # exact: only a (TB, 1) divide, gates sum to 1
    fw_ref[...] = full * inv
    idx_ref[...] = idx_full


def prepare_router_weight(weight: jax.Array, *, compute_dtype=jnp.bfloat16):
    """One-time prep: (E, F) nn.Linear weight -> lane-dense (F, E_pad) operand.

    Do this at parameter-setup time so no transpose/pad runs in the per-call path.
    """
    num_experts, in_features = weight.shape
    e_pad = _round_up(max(num_experts, 128), 128)
    wt = jnp.zeros((in_features, e_pad), compute_dtype)
    wt = wt.at[:, :num_experts].set(weight.T.astype(compute_dtype))
    return wt, num_experts


def topk_router(x: jax.Array, wt_padded: jax.Array, num_experts: int, k: int = 4,
                *, block_b: int = 512, unpad_output: bool = True):
    """x: (B, F); wt_padded: (F, E_pad) from prepare_router_weight.

    Returns (full_weights (B, num_experts) float32, top_k_indices (B, k) int32).
    Pass unpad_output=False to get the padded (B, E_pad) gate tensor (padded
    columns are exactly 0) and skip one extra HBM pass in the consumer.
    """
    b, f = x.shape
    f2, e_pad = wt_padded.shape
    assert f == f2 and k <= num_experts <= e_pad

    # Token-dim tile.  Cap tb so the grid has >= 2 steps whenever B allows it,
    # letting dimension_semantics=("parallel",) shard across both v7x TCs.
    tb = min(block_b, max(8, _round_up(pl.cdiv(b, 2), 8)))
    grid = (pl.cdiv(b, tb),)

    idx_pad = _round_up(max(k, 128), 128)   # lane-dense index output

    kernel = functools.partial(_topk_router_kernel, k=k, num_experts=num_experts)

    x_item = jnp.dtype(x.dtype).itemsize
    w_item = jnp.dtype(wt_padded.dtype).itemsize
    cost = pl.CostEstimate(
        flops=2 * b * f * e_pad,
        transcendentals=b * k,
        bytes_accessed=(b * f * x_item + f * e_pad * w_item
                        + b * e_pad * 4 + b * idx_pad * 4),
    )

    # Explicit VMEM budget: double-buffered x / outputs, single-buffered weight,
    # plus headroom for in-kernel f32 intermediates.  Clamp to 64 MiB (v7x).
    vmem_bytes = (2 * tb * f * x_item            # x tiles (2 buffers)
                  + f * e_pad * w_item           # resident weight (1 buffer)
                  + 2 * tb * e_pad * 4           # gate-output tiles
                  + 2 * tb * idx_pad * 4         # index-output tiles
                  + tb * f * 4 + 4 * tb * e_pad * 4   # kernel temporaries headroom
                  + (2 << 20))
    vmem_limit = int(min(max(vmem_bytes, 16 << 20), 64 << 20))

    full_pad, idx_full = pl.pallas_call(
        kernel,
        out_shape=(
            jax.ShapeDtypeStruct((b, e_pad), jnp.float32),
            jax.ShapeDtypeStruct((b, idx_pad), jnp.int32),
        ),
        grid=grid,
        in_specs=[
            pl.BlockSpec((tb, f), lambda i: (i, 0)),               # streamed x tile
            pl.BlockSpec((f, e_pad), lambda i: (0, 0),
                         pipeline_mode=pl.Buffered(1)),            # resident weight
        ],
        out_specs=(
            pl.BlockSpec((tb, e_pad), lambda i: (i, 0)),           # lane-dense gates
            pl.BlockSpec((tb, idx_pad), lambda i: (i, 0)),         # lane-dense indices
        ),
        compiler_params=pltpu.CompilerParams(
            dimension_semantics=("parallel",),
            vmem_limit_bytes=vmem_limit),
        cost_estimate=cost,
    )(x, wt_padded)

    top_k_indices = idx_full[:, :k]
    full_weights = full_pad[:, :num_experts] if unpad_output else full_pad
    return full_weights, top_k_indices


def init_rsqrt_uniform(key, shape, d):
    # Matches init_rsqrt_uniform_: uniform(-d^-0.5, d^-0.5)
    bound = d ** (-0.5)
    return jax.random.uniform(key, shape, jnp.float32, minval=-bound, maxval=bound)


if __name__ == "__main__":
    B, F, E, K = 8, 32, 32, 4

    key = jax.random.PRNGKey(0)
    kx, kw = jax.random.split(key)
    x = jax.random.normal(kx, (B, F), jnp.float32)
    weight = init_rsqrt_uniform(kw, (E, F), F)   # nn.Linear(F, E, bias=False).weight

    wt_padded, num_experts = prepare_router_weight(weight)   # one-time prep
    full_weights, top_k_indices = topk_router(x, wt_padded, num_experts, k=K)
    jax.block_until_ready((full_weights, top_k_indices))

    # Pure-JAX reference on the same bf16 operands (bf16 routing can flip
    # near-ties vs an f32 torch reference; acceptable for routing).
    logits = jnp.dot(x.astype(wt_padded.dtype), weight.T.astype(wt_padded.dtype),
                     preferred_element_type=jnp.float32)
    ref_idx = jnp.argsort(-logits, axis=-1)[:, :K]
    ref_tl = jnp.take_along_axis(logits, ref_idx, axis=-1)
    ref_w = jax.nn.softmax(ref_tl, axis=-1)
    ref_full = jnp.zeros_like(logits).at[jnp.arange(B)[:, None], ref_idx].set(ref_w)

    assert full_weights.shape == (B, E) and top_k_indices.shape == (B, K)
    assert jnp.allclose(full_weights, ref_full, atol=1e-3), "weights mismatch"
    assert jnp.array_equal(jnp.sort(top_k_indices, axis=-1),
                           jnp.sort(ref_idx, axis=-1)), "indices mismatch"

    print("KERNEL_OK")
</pallas_src>

<mosaic_0001>
module attributes {stable_mosaic.version = 11 : i64} {
  func.func @_topk_router_kernel(%arg0: i32, %arg1: memref<8x32xf32, #tpu.memory_space<vmem>>, %arg2: memref<32x128xbf16, #tpu.memory_space<vmem>>, %arg3: memref<8x128xf32, #tpu.memory_space<vmem>>, %arg4: memref<8x128xi32, #tpu.memory_space<vmem>>) attributes {dimension_semantics = [#tpu.dimension_semantics<parallel>], iteration_bounds = array<i64: 1>, scalar_prefetch = 0 : i64, scratch_operands = 0 : i64, tpu.core_type = #tpu.core_type<tc>, window_params = [{transform_indices = @transform_0, window_bounds = array<i64: 8, 32>}, {pipeline_mode = #tpu.pipeline_mode<synchronous>, transform_indices = @transform_1, window_bounds = array<i64: 32, 128>}, {transform_indices = @transform_2, window_bounds = array<i64: 8, 128>}, {transform_indices = @transform_3, window_bounds = array<i64: 8, 128>}]} {
    %c0 = arith.constant 0 : index
    %c0_0 = arith.constant 0 : index
    %0 = vector.load %arg1[%c0, %c0_0] : memref<8x32xf32, #tpu.memory_space<vmem>>, vector<8x32xf32>
    %1 = arith.truncf %0 : vector<8x32xf32> to vector<8x32xbf16>
    %c0_1 = arith.constant 0 : index
    %c0_2 = arith.constant 0 : index
    %2 = vector.load %arg2[%c0_1, %c0_2] : memref<32x128xbf16, #tpu.memory_space<vmem>>, vector<32x128xbf16>
    %cst = arith.constant dense<0.000000e+00> : vector<8x128xf32>
    %3 = tpu.matmul %1, %2, %cst {dimension_numbers = #tpu.dot_dimension_numbers<[1], [0], [0], [1], [0, 0, 1, 1], [], []>} : vector<8x32xbf16>, vector<32x128xbf16>, vector<8x128xf32> -> vector<8x128xf32>
    %4 = tpu.iota {dimensions = array<i32: 1>} : vector<8x128xi32>
    %5 = tpu.iota {dimensions = array<i32: 1>} : vector<8x128xi32>
    %c32_i32 = arith.constant 32 : i32
    %6 = vector.broadcast %c32_i32 : i32 to vector<8x128xi32>
    %7 = arith.cmpi slt, %4, %6 : vector<8x128xi32>
    %cst_3 = arith.constant 0xFF800000 : f32
    %8 = vector.broadcast %cst_3 : f32 to vector<8x128xf32>
    %9 = arith.select %7, %3, %8 : vector<8x128xi1>, vector<8x128xf32>
    %cst_4 = arith.constant 0.000000e+00 : f32
    %10 = vector.broadcast %cst_4 : f32 to vector<8x128xf32>
    %cst_5 = arith.constant 0.000000e+00 : f32
    %11 = vector.broadcast %cst_5 : f32 to vector<8x1xf32>
    %c0_i32 = arith.constant 0 : i32
    %12 = vector.broadcast %c0_i32 : i32 to vector<8x128xi32>
    %cst_6 = arith.constant dense<0xFF800000> : vector<8xf32>
    %13 = vector.multi_reduction <maximumf>, %9, %cst_6 [1] : vector<8x128xf32> to vector<8xf32>
    %14 = vector.shape_cast %13 : vector<8xf32> to vector<8x1xf32>
    %15 = vector.broadcast %14 : vector<8x1xf32> to vector<8x128xf32>
    %16 = arith.cmpf oeq, %9, %15 : vector<8x128xf32>
    %c128_i32 = arith.constant 128 : i32
    %17 = vector.broadcast %c128_i32 : i32 to vector<8x128xi32>
    %18 = arith.select %16, %4, %17 : vector<8x128xi1>, vector<8x128xi32>
    %cst_7 = arith.constant dense<2147483647> : vector<8xi32>
    %19 = vector.multi_reduction <minsi>, %18, %cst_7 [1] : vector<8x128xi32> to vector<8xi32>
    %20 = vector.shape_cast %19 : vector<8xi32> to vector<8x1xi32>
    %21 = vector.broadcast %20 : vector<8x1xi32> to vector<8x128xi32>
    %22 = arith.cmpi eq, %4, %21 : vector<8x128xi32>
    %23 = arith.subf %14, %14 : vector<8x1xf32>
    %24 = math.exp %23 : vector<8x1xf32>
    %cst_8 = arith.constant 0.000000e+00 : f32
    %25 = vector.shape_cast %24 : vector<8x1xf32> to vector<8x1xf32>
    %26 = vector.broadcast %25 : vector<8x1xf32> to vector<8x128xf32>
    %27 = vector.broadcast %cst_8 : f32 to vector<8x128xf32>
    %28 = arith.select %22, %26, %27 : vector<8x128xi1>, vector<8x128xf32>
    %29 = arith.addf %10, %28 : vector<8x128xf32>
    %30 = arith.addf %11, %24 : vector<8x1xf32>
    %c0_i32_9 = arith.constant 0 : i32
    %31 = vector.broadcast %c0_i32_9 : i32 to vector<8x128xi32>
    %32 = arith.cmpi eq, %5, %31 : vector<8x128xi32>
    %33 = vector.shape_cast %20 : vector<8x1xi32> to vector<8x1xi32>
    %34 = vector.broadcast %33 : vector<8x1xi32> to vector<8x128xi32>
    %35 = arith.select %32, %34, %12 : vector<8x128xi1>, vector<8x128xi32>
    %cst_10 = arith.constant 0xFF800000 : f32
    %36 = vector.broadcast %cst_10 : f32 to vector<8x128xf32>
    %37 = arith.select %22, %36, %9 : vector<8x128xi1>, vector<8x128xf32>
    %cst_11 = arith.constant dense<0xFF800000> : vector<8xf32>
    %38 = vector.multi_reduction <maximumf>, %37, %cst_11 [1] : vector<8x128xf32> to vector<8xf32>
    %39 = vector.shape_cast %38 : vector<8xf32> to vector<8x1xf32>
    %40 = vector.broadcast %39 : vector<8x1xf32> to vector<8x128xf32>
    %41 = arith.cmpf oeq, %37, %40 : vector<8x128xf32>
    %c128_i32_12 = arith.constant 128 : i32
    %42 = vector.broadcast %c128_i32_12 : i32 to vector<8x128xi32>
    %43 = arith.select %41, %4, %42 : vector<8x128xi1>, vector<8x128xi32>
    %cst_13 = arith.constant dense<2147483647> : vector<8xi32>
    %44 = vector.multi_reduction <minsi>, %43, %cst_13 [1] : vector<8x128xi32> to vector<8xi32>
    %45 = vector.shape_cast %44 : vector<8xi32> to vector<8x1xi32>
    %46 = vector.broadcast %45 : vector<8x1xi32> to vector<8x128xi32>
    %47 = arith.cmpi eq, %4, %46 : vector<8x128xi32>
    %48 = arith.subf %39, %14 : vector<8x1xf32>
    %49 = math.exp %48 : vector<8x1xf32>
    %cst_14 = arith.constant 0.000000e+00 : f32
    %50 = vector.shape_cast %49 : vector<8x1xf32> to vector<8x1xf32>
    %51 = vector.broadcast %50 : vector<8x1xf32> to vector<8x128xf32>
    %52 = vector.broadcast %cst_14 : f32 to vector<8x128xf32>
    %53 = arith.select %47, %51, %52 : vector<8x128xi1>, vector<8x128xf32>
    %54 = arith.addf %29, %53 : vector<8x128xf32>
    %55 = arith.addf %30, %49 : vector<8x1xf32>
    %c1_i32 = arith.constant 1 : i32
    %56 = vector.broadcast %c1_i32 : i32 to vector<8x128xi32>
    %57 = arith.cmpi eq, %5, %56 : vector<8x128xi32>
    %58 = vector.shape_cast %45 : vector<8x1xi32> to vector<8x1xi32>
    %59 = vector.broadcast %58 : vector<8x1xi32> to vector<8x128xi32>
    %60 = arith.select %57, %59, %35 : vector<8x128xi1>, vector<8x128xi32>
    %cst_15 = arith.constant 0xFF800000 : f32
    %61 = vector.broadcast %cst_15 : f32 to vector<8x128xf32>
    %62 = arith.select %47, %61, %37 : vector<8x128xi1>, vector<8x128xf32>
    %cst_16 = arith.constant dense<0xFF800000> : vector<8xf32>
    %63 = vector.multi_reduction <maximumf>, %62, %cst_16 [1] : vector<8x128xf32> to vector<8xf32>
    %64 = vector.shape_cast %63 : vector<8xf32> to vector<8x1xf32>
    %65 = vector.broadcast %64 : vector<8x1xf32> to vector<8x128xf32>
    %66 = arith.cmpf oeq, %62, %65 : vector<8x128xf32>
    %c128_i32_17 = arith.constant 128 : i32
    %67 = vector.broadcast %c128_i32_17 : i32 to vector<8x128xi32>
    %68 = arith.select %66, %4, %67 : vector<8x128xi1>, vector<8x128xi32>
    %cst_18 = arith.constant dense<2147483647> : vector<8xi32>
    %69 = vector.multi_reduction <minsi>, %68, %cst_18 [1] : vector<8x128xi32> to vector<8xi32>
    %70 = vector.shape_cast %69 : vector<8xi32> to vector<8x1xi32>
    %71 = vector.broadcast %70 : vector<8x1xi32> to vector<8x128xi32>
    %72 = arith.cmpi eq, %4, %71 : vector<8x128xi32>
    %73 = arith.subf %64, %14 : vector<8x1xf32>
    %74 = math.exp %73 : vector<8x1xf32>
    %cst_19 = arith.constant 0.000000e+00 : f32
    %75 = vector.shape_cast %74 : vector<8x1xf32> to vector<8x1xf32>
    %76 = vector.broadcast %75 : vector<8x1xf32> to vector<8x128xf32>
    %77 = vector.broadcast %cst_19 : f32 to vector<8x128xf32>
    %78 = arith.select %72, %76, %77 : vector<8x128xi1>, vector<8x128xf32>
    %79 = arith.addf %54, %78 : vector<8x128xf32>
    %80 = arith.addf %55, %74 : vector<8x1xf32>
    %c2_i32 = arith.constant 2 : i32
    %81 = vector.broadcast %c2_i32 : i32 to vector<8x128xi32>
    %82 = arith.cmpi eq, %5, %81 : vector<8x128xi32>
    %83 = vector.shape_cast %70 : vector<8x1xi32> to vector<8x1xi32>
    %84 = vector.broadcast %83 : vector<8x1xi32> to vector<8x128xi32>
    %85 = arith.select %82, %84, %60 : vector<8x128xi1>, vector<8x128xi32>
    %cst_20 = arith.constant 0xFF800000 : f32
    %86 = vector.broadcast %cst_20 : f32 to vector<8x128xf32>
    %87 = arith.select %72, %86, %62 : vector<8x128xi1>, vector<8x128xf32>
    %cst_21 = arith.constant dense<0xFF800000> : vector<8xf32>
    %88 = vector.multi_reduction <maximumf>, %87, %cst_21 [1] : vector<8x128xf32> to vector<8xf32>
    %89 = vector.shape_cast %88 : vector<8xf32> to vector<8x1xf32>
    %90 = vector.broadcast %89 : vector<8x1xf32> to vector<8x128xf32>
    %91 = arith.cmpf oeq, %87, %90 : vector<8x128xf32>
    %c128_i32_22 = arith.constant 128 : i32
    %92 = vector.broadcast %c128_i32_22 : i32 to vector<8x128xi32>
    %93 = arith.select %91, %4, %92 : vector<8x128xi1>, vector<8x128xi32>
    %cst_23 = arith.constant dense<2147483647> : vector<8xi32>
    %94 = vector.multi_reduction <minsi>, %93, %cst_23 [1] : vector<8x128xi32> to vector<8xi32>
    %95 = vector.shape_cast %94 : vector<8xi32> to vector<8x1xi32>
    %96 = vector.broadcast %95 : vector<8x1xi32> to vector<8x128xi32>
    %97 = arith.cmpi eq, %4, %96 : vector<8x128xi32>
    %98 = arith.subf %89, %14 : vector<8x1xf32>
    %99 = math.exp %98 : vector<8x1xf32>
    %cst_24 = arith.constant 0.000000e+00 : f32
    %100 = vector.shape_cast %99 : vector<8x1xf32> to vector<8x1xf32>
    %101 = vector.broadcast %100 : vector<8x1xf32> to vector<8x128xf32>
    %102 = vector.broadcast %cst_24 : f32 to vector<8x128xf32>
    %103 = arith.select %97, %101, %102 : vector<8x128xi1>, vector<8x128xf32>
    %104 = arith.addf %79, %103 : vector<8x128xf32>
    %105 = arith.addf %80, %99 : vector<8x1xf32>
    %c3_i32 = arith.constant 3 : i32
    %106 = vector.broadcast %c3_i32 : i32 to vector<8x128xi32>
    %107 = arith.cmpi eq, %5, %106 : vector<8x128xi32>
    %108 = vector.shape_cast %95 : vector<8x1xi32> to vector<8x1xi32>
    %109 = vector.broadcast %108 : vector<8x1xi32> to vector<8x128xi32>
    %110 = arith.select %107, %109, %85 : vector<8x128xi1>, vector<8x128xi32>
    %cst_25 = arith.constant 1.000000e+00 : f32
    %111 = vector.broadcast %cst_25 : f32 to vector<8x1xf32>
    %112 = arith.divf %111, %105 : vector<8x1xf32>
    %113 = vector.broadcast %112 : vector<8x1xf32> to vector<8x128xf32>
    %114 = arith.mulf %104, %113 : vector<8x128xf32>
    %c0_26 = arith.constant 0 : index
    %c0_27 = arith.constant 0 : index
    %115 = vector.load %arg3[%c0_26, %c0_27] : memref<8x128xf32, #tpu.memory_space<vmem>>, vector<8x128xf32>
    tpu.vector_store %arg3[%c0_26, %c0_27], %114 {strides = array<i32>} : memref<8x128xf32, #tpu.memory_space<vmem>>, vector<8x128xf32>,
    %c0_28 = arith.constant 0 : index
    %c0_29 = arith.constant 0 : index
    %116 = vector.load %arg4[%c0_28, %c0_29] : memref<8x128xi32, #tpu.memory_space<vmem>>, vector<8x128xi32>
    tpu.vector_store %arg4[%c0_28, %c0_29], %110 {strides = array<i32>} : memref<8x128xi32, #tpu.memory_space<vmem>>, vector<8x128xi32>,
    return
  }
  func.func @transform_0(%arg0: i32) -> (i32, i32) {
    %c0_i32 = arith.constant 0 : i32
    %c0_i32_0 = arith.constant 0 : i32
    return %arg0, %c0_i32 : i32, i32
  }
  func.func @transform_1(%arg0: i32) -> (i32, i32) {
    %c0_i32 = arith.constant 0 : i32
    %c0_i32_0 = arith.constant 0 : i32
    %c0_i32_1 = arith.constant 0 : i32
    return %c0_i32, %c0_i32_0 : i32, i32
  }
  func.func @transform_2(%arg0: i32) -> (i32, i32) {
    %c0_i32 = arith.constant 0 : i32
    %c0_i32_0 = arith.constant 0 : i32
    return %arg0, %c0_i32 : i32, i32
  }
  func.func @transform_3(%arg0: i32) -> (i32, i32) {
    %c0_i32 = arith.constant 0 : i32
    %c0_i32_0 = arith.constant 0 : i32
    return %arg0, %c0_i32 : i32, i32
  }
}

</mosaic_0001>

<llo_original>
// kernel: tpu_custom_call.1
$region0: #{tpu_custom_call.1}
  #allocation0 [shape = 'u32[]', space=smem, size = 0x4, offset = 0x4, fixed_abs, tag = 'smem constant byte address 0x4 - core index']
  #allocation1 [shape = 'u32[144,128]{1,0:T(1,128)}', space=vmem, size = 0x12000, scoped, tag = 'internal scratch']
  %s0 = inlined_call_operand.hbm [shape: f32[8,32], index: 0, kind: input, shape index: {}]
  %s1 = inlined_call_operand.hbm [shape: bf16[32,128], index: 1, kind: input, shape index: {}]
  %s2 = inlined_call_operand.hbm [shape: f32[8,128], index: 2, kind: output, shape index: {0}]
  %s3 = inlined_call_operand.hbm [shape: s32[8,128], index: 3, kind: output, shape index: {1}]
  %4 = xla_tuple %s2, %s3
  %s5 = sld [smem:[#allocation0]]
  $region34: #{tpu_custom_call.1} parent=0
    _
  %s7 = ssub.s32 1, %s5
  %s8 = scalar_select 0, %s7, %s5
  $region1: #{tpu_custom_call.1} parent=0
    #allocation2 [shape = 'u8[4096]{0}', space=vmem, size = 0x1000, scoped, tag = 'input window, operand 0, single buffered']
    #allocation3 [shape = 's32[1]{0}', space=sflag, size = 0x4, scoped, tag = 'scoped memory for tpu_custom_call.1']
    #allocation4 [shape = 's32[1]{0}', space=sflag, size = 0x4, scoped, tag = 'scoped memory for tpu_custom_call.1']
    #allocation5 [shape = 'u8[8192]{0}', space=vmem, size = 0x2000, scoped, tag = 'input window, operand 1, single buffered']
    #allocation6 [shape = 's32[1]{0}', space=sflag, size = 0x4, scoped, tag = 'scoped memory for tpu_custom_call.1']
    #allocation7 [shape = 'u8[4096]{0}', space=vmem, size = 0x1000, scoped, tag = 'output window, operand 0, single buffered']
    #allocation8 [shape = 'u8[4096]{0}', space=vmem, size = 0x1000, scoped, tag = 'output window, operand 1, single buffered']
    #allocation9 [shape = 's32[1]{0}', space=sflag, size = 0x4, scoped, tag = 'scoped memory for tpu_custom_call.1']
    %9 = vsyncpa [#allocation3], 0
    %10 = vsyncpa [#allocation6], 0
    %11 = vsyncpa [#allocation4], 0
    %12 = vsyncpa [#allocation9], 0
    // Predicated region
    $region2: #{tpu_custom_call.1} parent=1 // pred_check
      _
    $region3: #{tpu_custom_call.1} parent=1 // pred_check_branch
      %14 = sbr.rel (0) target = $region5
    $region4: #{tpu_custom_call.1} parent=1 // pred_region
      %s16 = ssub.s32 128, 128
      %17 = vsyncadd [#allocation3], %s16
      %s19 = sshll.u32 [#allocation2], 4
      %s20 = int_to_ptr.vmem [resolvable:$true] %s19
      %22 = dma.hbm_to_vmem [thread:$0]  %s0, 128, %s20, [#allocation3]
    $region5: #{tpu_custom_call.1} parent=1 // pred_fallthru
      _
    // Predicated region
    $region6: #{tpu_custom_call.1} parent=1 // pred_check
      _
    $region7: #{tpu_custom_call.1} parent=1 // pred_check_branch
      %24 = sbr.rel (0) target = $region9
    $region8: #{tpu_custom_call.1} parent=1 // pred_region
      %s26 = ssub.s32 256, 256
      %27 = vsyncadd [#allocation6], %s26
      %s28 = sshll.u32 [#allocation5], 4
      %s29 = int_to_ptr.vmem [resolvable:$true] %s28
      %34 = dma.hbm_to_vmem [thread:$0]  %s1, 256, %s29, [#allocation6], 64, 64, 4
    $region9: #{tpu_custom_call.1} parent=1 // pred_fallthru
      _
    // Predicated region
    $region10: #{tpu_custom_call.1} parent=1 // pred_check
      _
    $region11: #{tpu_custom_call.1} parent=1 // pred_check_branch
      %36 = sbr.rel (0) target = $region13
    $region12: #{tpu_custom_call.1} parent=1 // pred_region
      %37 = dma.done [#allocation3], 128
    $region13: #{tpu_custom_call.1} parent=1 // pred_fallthru
      _
    // Predicated region
    $region14: #{tpu_custom_call.1} parent=1 // pred_check
      _
    $region15: #{tpu_custom_call.1} parent=1 // pred_check_branch
      %39 = sbr.rel (0) target = $region17
    $region16: #{tpu_custom_call.1} parent=1 // pred_region
      %40 = dma.done [#allocation6], 256
    $region17: #{tpu_custom_call.1} parent=1 // pred_fallthru
      _
    %v42 = vld [vmem:[#allocation2] sm:$0xff]
    %v43 = vpack.c.bf16 %v42, %v42
    %v44 = vld [vmem:[#allocation5] sm:$0xf]
    %v45 = vld [vmem:[#allocation5 + $0x4] sm:$0xf]
    %v46 = vld [vmem:[#allocation5 + $0x8] sm:$0xf]
    %v47 = vld [vmem:[#allocation5 + $0xc] sm:$0xf]
    %v52 = vunpack.c.l.b16 %v44
    %v53 = vunpack.c.l.b16 %v45
    %v54 = vunpack.c.l.b16 %v46
    %v55 = vunpack.c.l.b16 %v47
    %v56 = vpack.c.b16 %v53, %v52
    %v57 = vpack.c.b16 %v55, %v54
    %vm60 = vcmask 261120
    %v62 = vsel %vm60, %v43, 0
    %64 = vmatprep.subr.bf16.mxu0 0
    %65 = vmatpush1.bf16.msra.mxu0 %v56
    %66 = vmatprep.subr.bf16.mxu0 0
    %67 = vmatpush1.bf16.msra.mxu0 %v57
    %68 = vmatprep.subr.bf16.mxu0 0
    %69 = vmatpush1.bf16.msra.mxu0 0
    %70 = vmatprep.subr.bf16.mxu0 0
    %71 = vmatpush1.bf16.msra.mxu0 0
    %72 = vmatprep.subr.bf16.mxu0 0
    %73 = vmatpush1.bf16.msra.mxu0 0
    %74 = vmatprep.subr.bf16.mxu0 0
    %75 = vmatpush1.bf16.msra.mxu0 0
    %76 = vmatprep.subr.bf16.mxu0 0
    %77 = vmatpush1.bf16.msra.mxu0 0
    %78 = vmatprep.subr.bf16.mxu0 0
    %79 = vmatpush1.bf16.msra.mxu0 0
    %80 = vmatprep.subr.bf16.mxu0 0
    %81 = vmatpush1.bf16.msra.mxu0 0
    %82 = vmatprep.subr.bf16.mxu0 0
    %83 = vmatpush1.bf16.msra.mxu0 0
    %84 = vmatprep.subr.bf16.mxu0 0
    %85 = vmatpush1.bf16.msra.mxu0 0
    %86 = vmatprep.subr.bf16.mxu0 0
    %87 = vmatpush1.bf16.msra.mxu0 0
    %88 = vmatprep.subr.bf16.mxu0 0
    %89 = vmatpush1.bf16.msra.mxu0 0
    %90 = vmatprep.subr.bf16.mxu0 0
    %91 = vmatpush1.bf16.msra.mxu0 0
    %92 = vmatprep.subr.bf16.mxu0 0
    %93 = vmatpush1.bf16.msra.mxu0 0
    %94 = vmatprep.subr.bf16.mxu0 0
    %95 = vmatpush1.bf16.msra.mxu0 0
    %96 = vmatprep.mubr.bf16.mxu0 0
    %97 = vmatmul.mubr.bf16.gmra.mrb[0].mxu0 %v62
    %v98 = vpop.f32.mrb[0].mxu0
    %v99 = vadd.f32 0.0, %v98
    %v100 = vpop.f32.mrb[0].mxu0
    %v101 = vpop.f32.mrb[0].mxu0
    %v102 = vpop.f32.mrb[0].mxu0
    %103 = vdwg.mxu0
    %v104 = vlaneseq
    %v105 = vand.u32 %v104, 127
    %vm106 = vcmp.lt.s32.totalorder %v105, 32
    %v107 = vsel %vm106, %v99, -inf
    %108 = vmax.xlane.f32.xlu0 %v107
    %v109 = vpop.xlane.xlu0 %108
    %vm110 = vcmp.eq.f32.partialorder %v107, %v109
    %v111 = vsel %vm110, %v105, 128
    %v112 = vand.u32 %v111, 65535
    %v113 = vshra.s32 %v111, 16
    %v114 = vcvt.s32.f32 %v112
    %v115 = vcvt.s32.f32 %v113
    %116 = vmin.xlane.f32.xlu0 %v115
    %v117 = vpop.xlane.xlu0 %116
    %vm118 = vcmp.eq.f32.partialorder %v115, %v117
    %v119 = vsel %vm118, %v114, inf
    %120 = vmin.xlane.f32.xlu0 %v119
    %v121 = vpop.xlane.xlu0 %120
    %v122 = vcvt.f32.s32 %v121
    %v123 = vcvt.f32.s32 %v117
    %v124 = vshll.u32 %v123, 16
    %v125 = vadd.s32 %v124, %v122
    %vm126 = vcmp.eq.s32.totalorder %v105, %v125
    %v127 = vsub.f32 %v109, %v109
    %v128 = vmul.f32 %v127, 1.442695
    %v129 = vpow.pop %v128
    %v130 = vsel %vm126, %v129, 0.0
    %v131 = vadd.f32 %v130, 0.0
    %v132 = vadd.f32 %v129, 0.0
    %vm133 = vcmp.eq.s32.totalorder %v105, 0
    %v134 = vsel %vm133, %v125, 0
    %v135 = vsel %vm126, -inf, %v107
    %136 = vmax.xlane.f32.xlu0 %v135
    %v137 = vpop.xlane.xlu0 %136
    %vm138 = vcmp.eq.f32.partialorder %v135, %v137
    %v139 = vsel %vm138, %v105, 128
    %v140 = vand.u32 %v139, 65535
    %v141 = vshra.s32 %v139, 16
    %v142 = vcvt.s32.f32 %v140
    %v143 = vcvt.s32.f32 %v141
    %144 = vmin.xlane.f32.xlu0 %v143
    %v145 = vpop.xlane.xlu0 %144
    %vm146 = vcmp.eq.f32.partialorder %v143, %v145
    %v147 = vsel %vm146, %v142, inf
    %148 = vmin.xlane.f32.xlu0 %v147
    %v149 = vpop.xlane.xlu0 %148
    %v150 = vcvt.f32.s32 %v149
    %v151 = vcvt.f32.s32 %v145
    %v152 = vshll.u32 %v151, 16
    %v153 = vadd.s32 %v152, %v150
    %vm154 = vcmp.eq.s32.totalorder %v105, %v153
    %v155 = vsub.f32 %v137, %v109
    %v156 = vmul.f32 %v155, 1.442695
    %v157 = vpow.pop %v156
    %v158 = vsel %vm154, %v157, 0.0
    %v159 = vadd.f32 %v131, %v158
    %v160 = vadd.f32 %v132, %v157
    %vm161 = vcmp.eq.s32.totalorder %v105, 1
    %v162 = vsel %vm161, %v153, %v134
    %v163 = vsel %vm154, -inf, %v135
    %164 = vmax.xlane.f32.xlu0 %v163
    %v165 = vpop.xlane.xlu0 %164
    %vm166 = vcmp.eq.f32.partialorder %v163, %v165
    %v167 = vsel %vm166, %v105, 128
    %v168 = vand.u32 %v167, 65535
    %v169 = vshra.s32 %v167, 16
    %v170 = vcvt.s32.f32 %v168
    %v171 = vcvt.s32.f32 %v169
    %172 = vmin.xlane.f32.xlu0 %v171
    %v173 = vpop.xlane.xlu0 %172
    %vm174 = vcmp.eq.f32.partialorder %v171, %v173
    %v175 = vsel %vm174, %v170, inf
    %176 = vmin.xlane.f32.xlu0 %v175
    %v177 = vpop.xlane.xlu0 %176
    %v178 = vcvt.f32.s32 %v177
    %v179 = vcvt.f32.s32 %v173
    %v180 = vshll.u32 %v179, 16
    %v181 = vadd.s32 %v180, %v178
    %vm182 = vcmp.eq.s32.totalorder %v105, %v181
    %v183 = vsub.f32 %v165, %v109
    %v184 = vmul.f32 %v183, 1.442695
    %v185 = vpow.pop %v184
    %v186 = vsel %vm182, %v185, 0.0
    %v187 = vadd.f32 %v159, %v186
    %v188 = vadd.f32 %v160, %v185
    %vm189 = vcmp.eq.s32.totalorder %v105, 2
    %v190 = vsel %vm189, %v181, %v162
    %v191 = vsel %vm182, -inf, %v163
    %192 = vmax.xlane.f32.xlu0 %v191
    %v193 = vpop.xlane.xlu0 %192
    %vm194 = vcmp.eq.f32.partialorder %v191, %v193
    %v195 = vsel %vm194, %v105, 128
    %v196 = vand.u32 %v195, 65535
    %v197 = vshra.s32 %v195, 16
    %v198 = vcvt.s32.f32 %v196
    %v199 = vcvt.s32.f32 %v197
    %200 = vmin.xlane.f32.xlu0 %v199
    %v201 = vpop.xlane.xlu0 %200
    %vm202 = vcmp.eq.f32.partialorder %v199, %v201
    %v203 = vsel %vm202, %v198, inf
    %204 = vmin.xlane.f32.xlu0 %v203
    %v205 = vpop.xlane.xlu0 %204
    %v206 = vcvt.f32.s32 %v205
    %v207 = vcvt.f32.s32 %v201
    %v208 = vshll.u32 %v207, 16
    %v209 = vadd.s32 %v208, %v206
    %vm210 = vcmp.eq.s32.totalorder %v105, %v209
    %v211 = vsub.f32 %v193, %v109
    %v212 = vmul.f32 %v211, 1.442695
    %v213 = vpow.pop %v212
    %v214 = vsel %vm210, %v213, 0.0
    %v215 = vadd.f32 %v187, %v214
    %v216 = vadd.f32 %v188, %v213
    %vm217 = vcmp.eq.s32.totalorder %v105, 3
    %v218 = vsel %vm217, %v209, %v190
    %v219 = vrcp.pop %v216
    %v220 = vmul.f32 1.0, %v219
    %v221 = vmul.f32 %v215, %v220
    %222 = vst [vmem:[#allocation7] sm:$0xff] %v221
    %223 = vst [vmem:[#allocation8] sm:$0xff] %v218
    // Predicated region
    $region18: #{tpu_custom_call.1} parent=1 // pred_check
      _
    $region19: #{tpu_custom_call.1} parent=1 // pred_check_branch
      %225 = sbr.rel (0) target = $region21
    $region20: #{tpu_custom_call.1} parent=1 // pred_region
      %s227 = ssub.s32 128, 128
      %228 = vsyncadd [#allocation4], %s227
      %s230 = sshll.u32 [#allocation7], 4
      %s231 = int_to_ptr.vmem [resolvable:$true] %s230
      %233 = dma.vmem_to_hbm [thread:$0]  %s231, 128, %s2, [#allocation4]
    $region21: #{tpu_custom_call.1} parent=1 // pred_fallthru
      _
    // Predicated region
    $region22: #{tpu_custom_call.1} parent=1 // pred_check
      _
    $region23: #{tpu_custom_call.1} parent=1 // pred_check_branch
      %235 = sbr.rel (0) target = $region25
    $region24: #{tpu_custom_call.1} parent=1 // pred_region
      %s237 = ssub.s32 128, 128
      %238 = vsyncadd [#allocation9], %s237
      %s240 = sshll.u32 [#allocation8], 4
      %s241 = int_to_ptr.vmem [resolvable:$true] %s240
      %243 = dma.vmem_to_hbm [thread:$0]  %s241, 128, %s3, [#allocation9]
    $region25: #{tpu_custom_call.1} parent=1 // pred_fallthru
      _
    // Predicated region
    $region26: #{tpu_custom_call.1} parent=1 // pred_check
      _
    $region27: #{tpu_custom_call.1} parent=1 // pred_check_branch
      %245 = sbr.rel (0) target = $region29
    $region28: #{tpu_custom_call.1} parent=1 // pred_region
      %246 = dma.done [#allocation4], 128
    $region29: #{tpu_custom_call.1} parent=1 // pred_fallthru
      _
    // Predicated region
    $region30: #{tpu_custom_call.1} parent=1 // pred_check
      _
    $region31: #{tpu_custom_call.1} parent=1 // pred_check_branch
      %248 = sbr.rel (0) target = $region33
    $region32: #{tpu_custom_call.1} parent=1 // pred_region
      %249 = dma.done [#allocation9], 128
    $region33: #{tpu_custom_call.1} parent=1 // pred_fallthru
      _
    %250 = vsyncpa [#allocation3], 1
    %251 = vsyncpa [#allocation6], 1
    %252 = vsyncpa [#allocation4], 1
    %253 = vsyncpa [#allocation9], 1

</llo_original>
